<compile_context>
chip_gen: v5e
topology: v5e:2x2
jax: 0.10.0
libtpu: 0.0.40
codegen_flags: <defaults>
</compile_context>

<pallas_src>
import functools

import jax
import jax.numpy as jnp
from jax.experimental import pallas as pl
from jax.experimental.pallas import tpu as pltpu

_NEG_BIG = -1e30  # finite "-inf" so exp(m_prev - m_new) never becomes NaN


def _supcon_kernel(*refs, has_mask, inv_temp, scale, n_anchor, n_contrast):
    if has_mask:
        (anchor_ref, contrast_ref, mask_ref, o_ref,
         m_ref, l_ref, t_ref, cnt_ref) = refs
    else:
        (anchor_ref, contrast_ref, alab_ref, clab_ref, o_ref,
         m_ref, l_ref, t_ref, cnt_ref) = refs

    k = pl.program_id(1)
    block_m = anchor_ref.shape[0]
    block_k = contrast_ref.shape[0]
    i0 = pl.program_id(0) * block_m
    j0 = k * block_k

    @pl.when(k == 0)
    def _init():
        m_ref[...] = jnp.full(m_ref.shape, _NEG_BIG, jnp.float32)
        l_ref[...] = jnp.zeros(l_ref.shape, jnp.float32)
        t_ref[...] = jnp.zeros(t_ref.shape, jnp.float32)
        cnt_ref[...] = jnp.zeros(cnt_ref.shape, jnp.float32)

    # Fold 1/temperature into the small anchor tile (TM*D muls, not TM*TK).
    a = anchor_ref[...] * inv_temp                      # [TM, Dp], native dtype
    b = contrast_ref[...]                               # [TK, Dp]
    # Contract feature axes of both operands (no in-kernel .T / XLU transpose).
    s = jax.lax.dot_general(a, b, (((1,), (1,)), ((), ())),
                            preferred_element_type=jnp.float32)  # [TM, TK] f32

    # Rebuild masks in-kernel from tile origins (no NxN mask traffic).
    row_ids = i0 + jax.lax.broadcasted_iota(jnp.int32, s.shape, 0)
    col_ids = j0 + jax.lax.broadcasted_iota(jnp.int32, s.shape, 1)
    valid_col = col_ids < n_contrast
    lmask = jnp.logical_and(row_ids != col_ids, valid_col)   # logits_mask

    if has_mask:
        posf = mask_ref[...].astype(jnp.float32) * lmask.astype(jnp.float32)
    else:
        posf = jnp.logical_and(alab_ref[...] == clab_ref[...],
                               lmask).astype(jnp.float32)

    # Online masked softmax statistics (running max / rescaled denominator).
    m_prev = m_ref[...]
    tile_max = jnp.max(jnp.where(valid_col, s, _NEG_BIG), axis=1, keepdims=True)
    m_new = jnp.maximum(m_prev, tile_max)
    alpha = jnp.exp(m_prev - m_new)
    p = jnp.where(lmask, jnp.exp(s - m_new), 0.0)
    l_ref[...] = alpha * l_ref[...] + jnp.sum(p, axis=1, keepdims=True)
    # Positive-pair sums are linear in s, so no rescaling is needed.
    t_ref[...] += jnp.sum(posf * s, axis=1, keepdims=True)
    cnt_ref[...] += jnp.sum(posf, axis=1, keepdims=True)
    m_ref[...] = m_new

    @pl.when(k == pl.num_programs(1) - 1)
    def _finalize():
        # mean_log_prob_pos = sum(mask*(s - m - log l)) / sum(mask)
        cnt = jnp.maximum(cnt_ref[...], 1.0)   # guard rows with no positives
        log_denom = m_ref[...] + jnp.log(l_ref[...])
        mean_log_prob_pos = t_ref[...] / cnt - log_denom
        loss_rows = (-scale) * mean_log_prob_pos
        rid = i0 + jax.lax.broadcasted_iota(jnp.int32, loss_rows.shape, 0)
        o_ref[...] = jnp.where(rid < n_anchor, loss_rows, 0.0).astype(o_ref.dtype)


def _round_up(x, m):
    return (x + m - 1) // m * m


def _pad2d(x, rows, cols):
    return jnp.zeros((rows, cols), x.dtype).at[:x.shape[0], :x.shape[1]].set(x)


def supcon_loss(features, labels=None, mask=None, *, temperature=0.07,
                contrast_mode='all', base_temperature=0.07):
    """Pallas implementation of SupConLoss.forward ('all' / 'one' modes)."""
    if features.ndim < 3:
        raise ValueError('`features` needs to be [bsz, n_views, ...]')
    if features.ndim > 3:
        features = features.reshape(features.shape[0], features.shape[1], -1)

    batch_size, contrast_count, feat_dim = features.shape

    if labels is not None and mask is not None:
        raise ValueError('Cannot define both `labels` and `mask`')

    # contrast_feature == torch.cat(torch.unbind(features, dim=1), dim=0)
    contrast_feature = jnp.transpose(features, (1, 0, 2)).reshape(
        contrast_count * batch_size, feat_dim)

    if contrast_mode == 'one':
        anchor_feature = features[:, 0]
        anchor_count = 1
    elif contrast_mode == 'all':
        anchor_feature = contrast_feature
        anchor_count = contrast_count
    else:
        raise ValueError('Unknown mode: {}'.format(contrast_mode))

    n_anchor = anchor_count * batch_size
    n_contrast = contrast_count * batch_size

    d_pad = _round_up(feat_dim, 128)

    # Tile selection: largest tiles that stay well inside scoped VMEM
    # (budgeted against v7x's 64 MiB physical VMEM; same config fits v5e/v6e).
    itemsize = jnp.dtype(features.dtype).itemsize
    block_m = min(256, _round_up(n_anchor, 8))
    block_k = min(512, _round_up(n_contrast, 128))

    def _vmem_bytes(tm, tk):
        inputs = 2 * (tm * d_pad + tk * d_pad) * itemsize   # double-buffered
        work = 4 * tm * tk * 4                              # f32 score tile etc.
        return inputs + work

    while _vmem_bytes(block_m, block_k) > 24 * 2**20 and block_k > 128:
        block_k //= 2
    while _vmem_bytes(block_m, block_k) > 24 * 2**20 and block_m > 8:
        block_m //= 2

    n_anchor_pad = _round_up(n_anchor, block_m)
    n_contrast_pad = _round_up(n_contrast, block_k)

    anchor_p = _pad2d(anchor_feature, n_anchor_pad, d_pad)
    contrast_p = _pad2d(contrast_feature, n_contrast_pad, d_pad)

    grid = (n_anchor_pad // block_m, n_contrast_pad // block_k)

    in_specs = [
        pl.BlockSpec((block_m, d_pad), lambda i, k: (i, 0)),   # anchor tile
        pl.BlockSpec((block_k, d_pad), lambda i, k: (k, 0)),   # contrast tile
    ]

    if mask is None:
        if labels is None:
            # SimCLR: mask = eye(B)  <=>  same-sample ids.
            base_ids = jnp.arange(batch_size, dtype=jnp.int32)
        else:
            base_ids = jnp.asarray(labels).reshape(-1)
            if base_ids.shape[0] != batch_size:
                raise ValueError('Num of labels does not match num of features')
            base_ids = base_ids.astype(jnp.int32)  # class indices
        a_ids = jnp.tile(base_ids, anchor_count)       # row r -> labels[r % B]
        c_ids = jnp.tile(base_ids, contrast_count)
        alab = jnp.full((n_anchor_pad,), -1, jnp.int32).at[:n_anchor].set(
            a_ids).reshape(n_anchor_pad, 1)
        clab = jnp.full((n_contrast_pad,), -2, jnp.int32).at[:n_contrast].set(
            c_ids).reshape(1, n_contrast_pad)
        extra_inputs = (alab, clab)
        in_specs += [
            pl.BlockSpec((block_m, 1), lambda i, k: (i, 0)),
            pl.BlockSpec((1, block_k), lambda i, k: (0, k)),
        ]
        has_mask = False
    else:
        # Explicit user mask: no label structure to exploit, so stream the
        # tiled mask block-by-block (uncommon path).
        mask_rep = jnp.tile(jnp.asarray(mask, jnp.float32),
                            (anchor_count, contrast_count))
        mask_p = _pad2d(mask_rep, n_anchor_pad, n_contrast_pad)
        extra_inputs = (mask_p,)
        in_specs += [pl.BlockSpec((block_m, block_k), lambda i, k: (i, k))]
        has_mask = True

    kernel = functools.partial(
        _supcon_kernel, has_mask=has_mask,
        inv_temp=1.0 / float(temperature),
        scale=float(temperature) / float(base_temperature),
        n_anchor=n_anchor, n_contrast=n_contrast)

    per_row = pl.pallas_call(
        kernel,
        out_shape=jax.ShapeDtypeStruct((n_anchor_pad, 1), jnp.float32),
        grid_spec=pltpu.PrefetchScalarGridSpec(
            num_scalar_prefetch=0,
            grid=grid,
            in_specs=in_specs,
            out_specs=pl.BlockSpec((block_m, 1), lambda i, k: (i, 0)),
            scratch_shapes=[pltpu.VMEM((block_m, 1), jnp.float32)] * 4),
        compiler_params=pltpu.CompilerParams(
            dimension_semantics=("parallel", "arbitrary"),
            vmem_limit_bytes=48 * 1024 * 1024),
    )(anchor_p, contrast_p, *extra_inputs)

    # Padded rows are exactly 0; final mean == loss.view(a, b).mean() in torch.
    return jnp.sum(per_row[:n_anchor, 0]) / n_anchor


def supcon_loss_ref(features, labels=None, *, temperature=0.07,
                    base_temperature=0.07):
    """Pure-JAX reference (contrast_mode='all') for correctness checking."""
    batch_size, contrast_count, feat_dim = features.shape
    if labels is None:
        mask = jnp.eye(batch_size, dtype=jnp.float32)
    else:
        labels = labels.reshape(-1, 1)
        mask = (labels == labels.T).astype(jnp.float32)
    contrast_feature = jnp.transpose(features, (1, 0, 2)).reshape(
        contrast_count * batch_size, feat_dim)
    anchor_feature = contrast_feature
    anchor_count = contrast_count
    logits = jnp.dot(anchor_feature, contrast_feature.T,
                     precision=jax.lax.Precision.HIGHEST) / temperature
    logits = logits - jnp.max(logits, axis=1, keepdims=True)
    n = anchor_count * batch_size
    logits_mask = 1.0 - jnp.eye(n, dtype=jnp.float32)
    mask = jnp.tile(mask, (anchor_count, contrast_count)) * logits_mask
    exp_logits = jnp.exp(logits) * logits_mask
    log_prob = logits - jnp.log(jnp.sum(exp_logits, axis=1, keepdims=True))
    mean_log_prob_pos = jnp.sum(mask * log_prob, axis=1) / jnp.sum(mask, axis=1)
    loss = -(temperature / base_temperature) * mean_log_prob_pos
    return jnp.mean(loss)


if __name__ == "__main__":
    key = jax.random.PRNGKey(0)
    k_feat, k_lab = jax.random.split(key)

    bsz, n_views, feat_dim = 8, 2, 32
    features = jax.random.normal(k_feat, (bsz, n_views, feat_dim), jnp.float32)
    # L2-normalize along the feature dim (standard SupCon usage).
    features = features / jnp.linalg.norm(features, axis=-1, keepdims=True)
    labels = jax.random.randint(k_lab, (bsz,), 0, 3)

    # Supervised path (labels -> in-kernel mask from label ids).
    loss = jax.block_until_ready(supcon_loss(features, labels=labels))
    ref = supcon_loss_ref(features, labels=labels)
    assert jnp.allclose(loss, ref, rtol=1e-4, atol=1e-4), (loss, ref)

    # SimCLR (unsupervised) path.
    loss_simclr = jax.block_until_ready(supcon_loss(features))
    ref_simclr = supcon_loss_ref(features)
    assert jnp.allclose(loss_simclr, ref_simclr, rtol=1e-4, atol=1e-4), (
        loss_simclr, ref_simclr)

    # Explicit-mask path (streams the tiled mask; should match the labels path).
    mask = (labels[:, None] == labels[None, :]).astype(jnp.float32)
    loss_mask = jax.block_until_ready(supcon_loss(features, mask=mask))
    assert jnp.allclose(loss_mask, ref, rtol=1e-4, atol=1e-4), (loss_mask, ref)

    print("KERNEL_OK")
</pallas_src>

<mosaic_0001>
module attributes {stable_mosaic.version = 11 : i64} {
  func.func @_supcon_kernel(%arg0: i32, %arg1: i32, %arg2: memref<16x128xf32, #tpu.memory_space<vmem>>, %arg3: memref<128x128xf32, #tpu.memory_space<vmem>>, %arg4: memref<16x1xi32, #tpu.memory_space<vmem>>, %arg5: memref<1x128xi32, #tpu.memory_space<vmem>>, %arg6: memref<16x1xf32, #tpu.memory_space<vmem>>, %arg7: memref<16x1xf32, #tpu.memory_space<vmem>>, %arg8: memref<16x1xf32, #tpu.memory_space<vmem>>, %arg9: memref<16x1xf32, #tpu.memory_space<vmem>>, %arg10: memref<16x1xf32, #tpu.memory_space<vmem>>) attributes {dimension_semantics = [#tpu.dimension_semantics<parallel>, #tpu.dimension_semantics<arbitrary>], iteration_bounds = array<i64: 1, 1>, scalar_prefetch = 0 : i64, scratch_operands = 4 : i64, tpu.core_type = #tpu.core_type<tc>, window_params = [{transform_indices = @transform_0, window_bounds = array<i64: 16, 128>}, {transform_indices = @transform_1, window_bounds = array<i64: 128, 128>}, {transform_indices = @transform_2, window_bounds = array<i64: 16, 1>}, {transform_indices = @transform_3, window_bounds = array<i64: 1, 128>}, {transform_indices = @transform_4, window_bounds = array<i64: 16, 1>}]} {
    %c16_i32 = arith.constant 16 : i32
    %0 = arith.muli %arg0, %c16_i32 : i32
    %c128_i32 = arith.constant 128 : i32
    %1 = arith.muli %arg1, %c128_i32 : i32
    %c0_i32 = arith.constant 0 : i32
    %2 = arith.cmpi eq, %arg1, %c0_i32 : i32
    %3 = arith.extui %2 : i1 to i32
    %c0_i32_0 = arith.constant 0 : i32
    %4 = arith.cmpi ne, %3, %c0_i32_0 : i32
    scf.if %4 {
      %cst_34 = arith.constant -1.000000e+30 : f32
      %62 = vector.broadcast %cst_34 : f32 to vector<16x1xf32>
      %c0_35 = arith.constant 0 : index
      %c0_36 = arith.constant 0 : index
      %63 = vector.load %arg7[%c0_35, %c0_36] : memref<16x1xf32, #tpu.memory_space<vmem>>, vector<16x1xf32>
      tpu.vector_store %arg7[%c0_35, %c0_36], %62 {strides = array<i32>} : memref<16x1xf32, #tpu.memory_space<vmem>>, vector<16x1xf32>,
      %cst_37 = arith.constant 0.000000e+00 : f32
      %64 = vector.broadcast %cst_37 : f32 to vector<16x1xf32>
      %c0_38 = arith.constant 0 : index
      %c0_39 = arith.constant 0 : index
      %65 = vector.load %arg8[%c0_38, %c0_39] : memref<16x1xf32, #tpu.memory_space<vmem>>, vector<16x1xf32>
      tpu.vector_store %arg8[%c0_38, %c0_39], %64 {strides = array<i32>} : memref<16x1xf32, #tpu.memory_space<vmem>>, vector<16x1xf32>,
      %cst_40 = arith.constant 0.000000e+00 : f32
      %66 = vector.broadcast %cst_40 : f32 to vector<16x1xf32>
      %c0_41 = arith.constant 0 : index
      %c0_42 = arith.constant 0 : index
      %67 = vector.load %arg9[%c0_41, %c0_42] : memref<16x1xf32, #tpu.memory_space<vmem>>, vector<16x1xf32>
      tpu.vector_store %arg9[%c0_41, %c0_42], %66 {strides = array<i32>} : memref<16x1xf32, #tpu.memory_space<vmem>>, vector<16x1xf32>,
      %cst_43 = arith.constant 0.000000e+00 : f32
      %68 = vector.broadcast %cst_43 : f32 to vector<16x1xf32>
      %c0_44 = arith.constant 0 : index
      %c0_45 = arith.constant 0 : index
      %69 = vector.load %arg10[%c0_44, %c0_45] : memref<16x1xf32, #tpu.memory_space<vmem>>, vector<16x1xf32>
      tpu.vector_store %arg10[%c0_44, %c0_45], %68 {strides = array<i32>} : memref<16x1xf32, #tpu.memory_space<vmem>>, vector<16x1xf32>,
    } else {
    }
    %c0 = arith.constant 0 : index
    %c0_1 = arith.constant 0 : index
    %5 = vector.load %arg2[%c0, %c0_1] : memref<16x128xf32, #tpu.memory_space<vmem>>, vector<16x128xf32>
    %cst = arith.constant 14.2857141 : f32
    %6 = vector.broadcast %cst : f32 to vector<16x128xf32>
    %7 = arith.mulf %5, %6 : vector<16x128xf32>
    %c0_2 = arith.constant 0 : index
    %c0_3 = arith.constant 0 : index
    %8 = vector.load %arg3[%c0_2, %c0_3] : memref<128x128xf32, #tpu.memory_space<vmem>>, vector<128x128xf32>
    %cst_4 = arith.constant dense<0.000000e+00> : vector<16x128xf32>
    %9 = tpu.matmul %7, %8, %cst_4 {dimension_numbers = #tpu.dot_dimension_numbers<[1], [1], [0], [0], [0, 0, 1, 0], [], []>} : vector<16x128xf32>, vector<128x128xf32>, vector<16x128xf32> -> vector<16x128xf32>
    %10 = tpu.iota {dimensions = array<i32: 0>} : vector<16x128xi32>
    %11 = vector.broadcast %0 : i32 to vector<16x128xi32>
    %12 = arith.addi %11, %10 : vector<16x128xi32>
    %13 = tpu.iota {dimensions = array<i32: 1>} : vector<16x128xi32>
    %14 = vector.broadcast %1 : i32 to vector<16x128xi32>
    %15 = arith.addi %14, %13 : vector<16x128xi32>
    %c16_i32_5 = arith.constant 16 : i32
    %16 = vector.broadcast %c16_i32_5 : i32 to vector<16x128xi32>
    %17 = arith.cmpi slt, %15, %16 : vector<16x128xi32>
    %18 = arith.cmpi ne, %12, %15 : vector<16x128xi32>
    %19 = arith.andi %18, %17 : vector<16x128xi1>
    %c0_6 = arith.constant 0 : index
    %c0_7 = arith.constant 0 : index
    %20 = vector.load %arg4[%c0_6, %c0_7] : memref<16x1xi32, #tpu.memory_space<vmem>>, vector<16x1xi32>
    %c0_8 = arith.constant 0 : index
    %c0_9 = arith.constant 0 : index
    %21 = vector.load %arg5[%c0_8, %c0_9] : memref<1x128xi32, #tpu.memory_space<vmem>>, vector<1x128xi32>
    %22 = vector.broadcast %20 : vector<16x1xi32> to vector<16x128xi32>
    %23 = vector.broadcast %21 : vector<1x128xi32> to vector<16x128xi32>
    %24 = arith.cmpi eq, %22, %23 : vector<16x128xi32>
    %25 = arith.andi %24, %19 : vector<16x128xi1>
    %26 = arith.extui %25 : vector<16x128xi1> to vector<16x128xi32>
    %27 = arith.sitofp %26 : vector<16x128xi32> to vector<16x128xf32>
    %c0_10 = arith.constant 0 : index
    %c0_11 = arith.constant 0 : index
    %28 = vector.load %arg7[%c0_10, %c0_11] : memref<16x1xf32, #tpu.memory_space<vmem>>, vector<16x1xf32>
    %cst_12 = arith.constant -1.000000e+30 : f32
    %29 = vector.broadcast %cst_12 : f32 to vector<16x128xf32>
    %30 = arith.select %17, %9, %29 : vector<16x128xi1>, vector<16x128xf32>
    %cst_13 = arith.constant dense<0xFF800000> : vector<16xf32>
    %31 = vector.multi_reduction <maximumf>, %30, %cst_13 [1] : vector<16x128xf32> to vector<16xf32>
    %32 = vector.shape_cast %31 : vector<16xf32> to vector<16x1xf32>
    %33 = arith.maximumf %28, %32 : vector<16x1xf32>
    %34 = arith.subf %28, %33 : vector<16x1xf32>
    %35 = math.exp %34 : vector<16x1xf32>
    %36 = vector.broadcast %33 : vector<16x1xf32> to vector<16x128xf32>
    %37 = arith.subf %9, %36 : vector<16x128xf32>
    %38 = math.exp %37 : vector<16x128xf32>
    %cst_14 = arith.constant 0.000000e+00 : f32
    %39 = vector.broadcast %cst_14 : f32 to vector<16x128xf32>
    %40 = arith.select %19, %38, %39 : vector<16x128xi1>, vector<16x128xf32>
    %c0_15 = arith.constant 0 : index
    %c0_16 = arith.constant 0 : index
    %41 = vector.load %arg8[%c0_15, %c0_16] : memref<16x1xf32, #tpu.memory_space<vmem>>, vector<16x1xf32>
    %42 = arith.mulf %35, %41 : vector<16x1xf32>
    %cst_17 = arith.constant dense<0.000000e+00> : vector<16xf32>
    %43 = vector.multi_reduction <add>, %40, %cst_17 [1] : vector<16x128xf32> to vector<16xf32>
    %44 = vector.shape_cast %43 : vector<16xf32> to vector<16x1xf32>
    %45 = arith.addf %42, %44 : vector<16x1xf32>
    %c0_18 = arith.constant 0 : index
    %c0_19 = arith.constant 0 : index
    %46 = vector.load %arg8[%c0_18, %c0_19] : memref<16x1xf32, #tpu.memory_space<vmem>>, vector<16x1xf32>
    tpu.vector_store %arg8[%c0_18, %c0_19], %45 {strides = array<i32>} : memref<16x1xf32, #tpu.memory_space<vmem>>, vector<16x1xf32>,
    %c0_20 = arith.constant 0 : index
    %c0_21 = arith.constant 0 : index
    %47 = vector.load %arg9[%c0_20, %c0_21] : memref<16x1xf32, #tpu.memory_space<vmem>>, vector<16x1xf32>
    %48 = arith.mulf %27, %9 : vector<16x128xf32>
    %cst_22 = arith.constant dense<0.000000e+00> : vector<16xf32>
    %49 = vector.multi_reduction <add>, %48, %cst_22 [1] : vector<16x128xf32> to vector<16xf32>
    %50 = vector.shape_cast %49 : vector<16xf32> to vector<16x1xf32>
    %51 = arith.addf %47, %50 : vector<16x1xf32>
    %c0_23 = arith.constant 0 : index
    %c0_24 = arith.constant 0 : index
    %52 = vector.load %arg9[%c0_23, %c0_24] : memref<16x1xf32, #tpu.memory_space<vmem>>, vector<16x1xf32>
    tpu.vector_store %arg9[%c0_23, %c0_24], %51 {strides = array<i32>} : memref<16x1xf32, #tpu.memory_space<vmem>>, vector<16x1xf32>,
    %c0_25 = arith.constant 0 : index
    %c0_26 = arith.constant 0 : index
    %53 = vector.load %arg10[%c0_25, %c0_26] : memref<16x1xf32, #tpu.memory_space<vmem>>, vector<16x1xf32>
    %cst_27 = arith.constant dense<0.000000e+00> : vector<16xf32>
    %54 = vector.multi_reduction <add>, %27, %cst_27 [1] : vector<16x128xf32> to vector<16xf32>
    %55 = vector.shape_cast %54 : vector<16xf32> to vector<16x1xf32>
    %56 = arith.addf %53, %55 : vector<16x1xf32>
    %c0_28 = arith.constant 0 : index
    %c0_29 = arith.constant 0 : index
    %57 = vector.load %arg10[%c0_28, %c0_29] : memref<16x1xf32, #tpu.memory_space<vmem>>, vector<16x1xf32>
    tpu.vector_store %arg10[%c0_28, %c0_29], %56 {strides = array<i32>} : memref<16x1xf32, #tpu.memory_space<vmem>>, vector<16x1xf32>,
    %c0_30 = arith.constant 0 : index
    %c0_31 = arith.constant 0 : index
    %58 = vector.load %arg7[%c0_30, %c0_31] : memref<16x1xf32, #tpu.memory_space<vmem>>, vector<16x1xf32>
    tpu.vector_store %arg7[%c0_30, %c0_31], %33 {strides = array<i32>} : memref<16x1xf32, #tpu.memory_space<vmem>>, vector<16x1xf32>,
    %c0_i32_32 = arith.constant 0 : i32
    %59 = arith.cmpi eq, %arg1, %c0_i32_32 : i32
    %60 = arith.extui %59 : i1 to i32
    %c0_i32_33 = arith.constant 0 : i32
    %61 = arith.cmpi ne, %60, %c0_i32_33 : i32
    scf.if %61 {
      %c0_34 = arith.constant 0 : index
      %c0_35 = arith.constant 0 : index
      %62 = vector.load %arg10[%c0_34, %c0_35] : memref<16x1xf32, #tpu.memory_space<vmem>>, vector<16x1xf32>
      %cst_36 = arith.constant 1.000000e+00 : f32
      %63 = vector.broadcast %cst_36 : f32 to vector<16x1xf32>
      %64 = arith.maximumf %62, %63 : vector<16x1xf32>
      %c0_37 = arith.constant 0 : index
      %c0_38 = arith.constant 0 : index
      %65 = vector.load %arg7[%c0_37, %c0_38] : memref<16x1xf32, #tpu.memory_space<vmem>>, vector<16x1xf32>
      %c0_39 = arith.constant 0 : index
      %c0_40 = arith.constant 0 : index
      %66 = vector.load %arg8[%c0_39, %c0_40] : memref<16x1xf32, #tpu.memory_space<vmem>>, vector<16x1xf32>
      %67 = math.log %66 : vector<16x1xf32>
      %68 = arith.addf %65, %67 : vector<16x1xf32>
      %c0_41 = arith.constant 0 : index
      %c0_42 = arith.constant 0 : index
      %69 = vector.load %arg9[%c0_41, %c0_42] : memref<16x1xf32, #tpu.memory_space<vmem>>, vector<16x1xf32>
      %70 = arith.divf %69, %64 : vector<16x1xf32>
      %71 = arith.subf %70, %68 : vector<16x1xf32>
      %cst_43 = arith.constant -1.000000e+00 : f32
      %72 = vector.broadcast %cst_43 : f32 to vector<16x1xf32>
      %73 = arith.mulf %72, %71 : vector<16x1xf32>
      %74 = tpu.iota {dimensions = array<i32: 0>} : vector<16x1xi32>
      %75 = vector.broadcast %0 : i32 to vector<16x1xi32>
      %76 = arith.addi %75, %74 : vector<16x1xi32>
      %c16_i32_44 = arith.constant 16 : i32
      %77 = vector.broadcast %c16_i32_44 : i32 to vector<16x1xi32>
      %78 = arith.cmpi slt, %76, %77 : vector<16x1xi32>
      %cst_45 = arith.constant 0.000000e+00 : f32
      %79 = vector.broadcast %cst_45 : f32 to vector<16x1xf32>
      %80 = arith.select %78, %73, %79 : vector<16x1xi1>, vector<16x1xf32>
      %c0_46 = arith.constant 0 : index
      %c0_47 = arith.constant 0 : index
      %81 = vector.load %arg6[%c0_46, %c0_47] : memref<16x1xf32, #tpu.memory_space<vmem>>, vector<16x1xf32>
      tpu.vector_store %arg6[%c0_46, %c0_47], %80 {strides = array<i32>} : memref<16x1xf32, #tpu.memory_space<vmem>>, vector<16x1xf32>,
    } else {
    }
    return
  }
  func.func @transform_0(%arg0: i32, %arg1: i32) -> (i32, i32) {
    %c0_i32 = arith.constant 0 : i32
    %c0_i32_0 = arith.constant 0 : i32
    return %arg0, %c0_i32 : i32, i32
  }
  func.func @transform_1(%arg0: i32, %arg1: i32) -> (i32, i32) {
    %c0_i32 = arith.constant 0 : i32
    %c0_i32_0 = arith.constant 0 : i32
    return %arg1, %c0_i32 : i32, i32
  }
  func.func @transform_2(%arg0: i32, %arg1: i32) -> (i32, i32) {
    %c0_i32 = arith.constant 0 : i32
    %c0_i32_0 = arith.constant 0 : i32
    return %arg0, %c0_i32 : i32, i32
  }
  func.func @transform_3(%arg0: i32, %arg1: i32) -> (i32, i32) {
    %c0_i32 = arith.constant 0 : i32
    %c0_i32_0 = arith.constant 0 : i32
    return %c0_i32, %arg1 : i32, i32
  }
  func.func @transform_4(%arg0: i32, %arg1: i32) -> (i32, i32) {
    %c0_i32 = arith.constant 0 : i32
    %c0_i32_0 = arith.constant 0 : i32
    return %arg0, %c0_i32 : i32, i32
  }
}

</mosaic_0001>

<llo_original>
// kernel: tpu_custom_call.1
$region0: #{tpu_custom_call.1}
  #allocation0 [shape = 'u32[]', space=smem, size = 0x4, offset = 0x4, fixed_abs, tag = 'smem constant byte address 0x4 - core index']
  #allocation1 [shape = 'u32[72,128]{1,0:T(1,128)}', space=vmem, size = 0x9000, scoped, tag = 'internal scratch']
  #allocation2 [shape = 'f32[16,1]{1,0:T(8,128)}', space=vmem, size = 0x2000, scoped, tag = 'scratch operand']
  #allocation3 [shape = 'f32[16,1]{1,0:T(8,128)}', space=vmem, size = 0x2000, scoped, tag = 'scratch operand']
  #allocation4 [shape = 'f32[16,1]{1,0:T(8,128)}', space=vmem, size = 0x2000, scoped, tag = 'scratch operand']
  #allocation5 [shape = 'f32[16,1]{1,0:T(8,128)}', space=vmem, size = 0x2000, scoped, tag = 'scratch operand']
  %s0 = inlined_call_operand.vmem [shape: f32[16,128], index: 0, kind: input, shape index: {}]
  %s1 = inlined_call_operand.hbm [shape: f32[128,128], index: 1, kind: input, shape index: {}]
  %s2 = inlined_call_operand.vmem [shape: s32[16,1], index: 2, kind: input, shape index: {}]
  %s3 = inlined_call_operand.vmem [shape: s32[1,128], index: 3, kind: input, shape index: {}]
  %s4 = inlined_call_operand.vmem [shape: f32[16,1], index: 4, kind: output, shape index: {}]
  %s5 = sld [smem:[#allocation0]]
  $region38: #{tpu_custom_call.1} parent=0
    _
  %s7 = ssub.s32 1, %s5
  %s8 = scalar_select 0, %s7, %s5
  $region1: #{tpu_custom_call.1} parent=0
    #allocation6 [shape = 'u8[65536]{0}', space=vmem, size = 0x10000, scoped, tag = 'input window, operand 1, single buffered']
    #allocation7 [shape = 's32[1]{0}', space=sflag, size = 0x4, scoped, tag = 'scoped memory for tpu_custom_call.1']
    %9 = vsyncpa [#allocation7], 0
    // Predicated region
    $region2: #{tpu_custom_call.1} parent=1 // pred_check
      _
    $region3: #{tpu_custom_call.1} parent=1 // pred_check_branch
      %11 = sbr.rel (0) target = $region5
    $region4: #{tpu_custom_call.1} parent=1 // pred_region
      _
    $region5: #{tpu_custom_call.1} parent=1 // pred_fallthru
      _
    // Predicated region
    $region6: #{tpu_custom_call.1} parent=1 // pred_check
      _
    $region7: #{tpu_custom_call.1} parent=1 // pred_check_branch
      %13 = sbr.rel (0) target = $region9
    $region8: #{tpu_custom_call.1} parent=1 // pred_region
      %15 = vsyncadd [#allocation7], 0
      %s16 = sshll.u32 %s1, 4
      %s17 = int_to_ptr.hbm [resolvable:$true] %s16
      %s18 = sshll.u32 [#allocation6], 4
      %s19 = int_to_ptr.vmem [resolvable:$true] %s18
      %24 = dma.hbm_to_vmem [thread:$0]  %s17, 2048, %s19, [#allocation7], 128, 128, 8
    $region9: #{tpu_custom_call.1} parent=1 // pred_fallthru
      _
    // Predicated region
    $region10: #{tpu_custom_call.1} parent=1 // pred_check
      _
    $region11: #{tpu_custom_call.1} parent=1 // pred_check_branch
      %26 = sbr.rel (0) target = $region13
    $region12: #{tpu_custom_call.1} parent=1 // pred_region
      _
    $region13: #{tpu_custom_call.1} parent=1 // pred_fallthru
      _
    // Predicated region
    $region14: #{tpu_custom_call.1} parent=1 // pred_check
      _
    $region15: #{tpu_custom_call.1} parent=1 // pred_check_branch
      %28 = sbr.rel (0) target = $region17
    $region16: #{tpu_custom_call.1} parent=1 // pred_region
      _
    $region17: #{tpu_custom_call.1} parent=1 // pred_fallthru
      _
    // Predicated region
    $region18: #{tpu_custom_call.1} parent=1 // pred_check
      _
    $region19: #{tpu_custom_call.1} parent=1 // pred_check_branch
      %30 = sbr.rel (0) target = $region21
    $region20: #{tpu_custom_call.1} parent=1 // pred_region
      %32 = dma.done [#allocation7], 2048
    $region21: #{tpu_custom_call.1} parent=1 // pred_fallthru
      _
    %s33 = smul.u32 0, 16
    %s34 = smul.u32 0, 128
    %p35 = scmp.eq.s32.totalorder 0, 0
    // Predicated region
    $region22: #{tpu_custom_call.1} parent=1 // pred_check
      %p36 = pneg %p35
    $region23: #{tpu_custom_call.1} parent=1 // pred_check_branch
      %38 = sbr.rel (%p36) target = $region25
    $region24: #{tpu_custom_call.1} parent=1 // pred_region
      %vm39 = vcmask 7168
      %40 = vst.msk [vmem:[#allocation2] sm:$0xff] %vm39, -1e+30
      %41 = vst.msk [vmem:[#allocation2 + $0x8] sm:$0xff] %vm39, -1e+30
      %42 = vst.msk [vmem:[#allocation3] sm:$0xff] %vm39, 0.0
      %43 = vst.msk [vmem:[#allocation3 + $0x8] sm:$0xff] %vm39, 0.0
      %44 = vst.msk [vmem:[#allocation4] sm:$0xff] %vm39, 0.0
      %45 = vst.msk [vmem:[#allocation4 + $0x8] sm:$0xff] %vm39, 0.0
      %46 = vst.msk [vmem:[#allocation5] sm:$0xff] %vm39, 0.0
      %47 = vst.msk [vmem:[#allocation5 + $0x8] sm:$0xff] %vm39, 0.0
    $region25: #{tpu_custom_call.1} parent=1 // pred_fallthru
      _
    %v48 = vld [vmem:[%s0] sm:$0xff]
    %v49 = vld [vmem:[%s0 + $0x8] sm:$0xff]
    %v50 = vmul.f32 %v48, 14.285714
    %v51 = vmul.f32 %v49, 14.285714
    %v52 = vld [vmem:[#allocation6] sm:$0xff]
    %v53 = vld [vmem:[#allocation6 + $0x8] sm:$0xff]
    %v54 = vld [vmem:[#allocation6 + $0x10] sm:$0xff]
    %v55 = vld [vmem:[#allocation6 + $0x18] sm:$0xff]
    %v56 = vld [vmem:[#allocation6 + $0x20] sm:$0xff]
    %v57 = vld [vmem:[#allocation6 + $0x28] sm:$0xff]
    %v58 = vld [vmem:[#allocation6 + $0x30] sm:$0xff]
    %v59 = vld [vmem:[#allocation6 + $0x38] sm:$0xff]
    %v60 = vld [vmem:[#allocation6 + $0x40] sm:$0xff]
    %v61 = vld [vmem:[#allocation6 + $0x48] sm:$0xff]
    %v62 = vld [vmem:[#allocation6 + $0x50] sm:$0xff]
    %v63 = vld [vmem:[#allocation6 + $0x58] sm:$0xff]
    %v64 = vld [vmem:[#allocation6 + $0x60] sm:$0xff]
    %v65 = vld [vmem:[#allocation6 + $0x68] sm:$0xff]
    %v66 = vld [vmem:[#allocation6 + $0x70] sm:$0xff]
    %v67 = vld [vmem:[#allocation6 + $0x78] sm:$0xff]
    %68 = vmatpush.xpose.msra.mxu0 %v67
    %69 = vmatpush.xpose.msra.mxu0 %v66
    %70 = vmatpush.xpose.msra.mxu0 %v65
    %71 = vmatpush.xpose.msra.mxu0 %v64
    %72 = vmatpush.xpose.msra.mxu0 %v63
    %73 = vmatpush.xpose.msra.mxu0 %v62
    %74 = vmatpush.xpose.msra.mxu0 %v61
    %75 = vmatpush.xpose.msra.mxu0 %v60
    %76 = vmatpush.xpose.msra.mxu0 %v59
    %77 = vmatpush.xpose.msra.mxu0 %v58
    %78 = vmatpush.xpose.msra.mxu0 %v57
    %79 = vmatpush.xpose.msra.mxu0 %v56
    %80 = vmatpush.xpose.msra.mxu0 %v55
    %81 = vmatpush.xpose.msra.mxu0 %v54
    %82 = vmatpush.xpose.msra.mxu0 %v53
    %83 = vmatpush.xpose.msra.mxu0 %v52
    %84 = vmatmul.f32.gmra.mxu0 %v50
    %v85 = vpop.f32.mrf.mxu0
    %v86 = vadd.f32 0.0, %v85
    %87 = vmatmul.f32.gmra.mxu0 %v51
    %v88 = vpop.f32.mrf.mxu0
    %v89 = vadd.f32 0.0, %v88
    %90 = vdwg.mxu0
    %v91 = vlaneseq
    %v92 = vshrl.u32 %v91, 7
    %v93 = vadd.s32 %v92, 8
    %v94 = vstv %s33
    %v95 = vadd.s32 %v94, %v92
    %v96 = vadd.s32 %v94, %v93
    %v97 = vlaneseq
    %v98 = vand.u32 %v97, 127
    %v99 = vstv %s34
    %v100 = vadd.s32 %v99, %v98
    %vm101 = vcmp.lt.s32.totalorder %v100, 16
    %vm102 = vcmp.ne.s32.totalorder %v95, %v100
    %vm103 = vcmp.ne.s32.totalorder %v96, %v100
    %vm104 = vmand %vm102, %vm101
    %vm105 = vmand %vm103, %vm101
    %v106 = vld [vmem:[%s2] sm:$0xff]
    %v107 = vld [vmem:[%s2 + $0x8] sm:$0xff]
    %v108 = vld [vmem:[%s3] sm:$0x1]
    %109 = vset.pattern.permute.xlu0 0
    %110 = vperm.xlu0 %109, %v106
    %v111 = vpop.permute.xlu0 %110
    %112 = vset.pattern.permute.xlu0 0
    %113 = vperm.xlu0 %112, %v107
    %v114 = vpop.permute.xlu0 %113
    %v115 = vperm.slane %v108, 0
    %vm116 = vcmp.eq.s32.totalorder %v111, %v115
    %vm117 = vcmp.eq.s32.totalorder %v114, %v115
    %vm118 = vmand %vm116, %vm104
    %vm119 = vmand %vm117, %vm105
    %v120 = vsel %vm118, 1, 0
    %v121 = vsel %vm119, 1, 0
    %v122 = vcvt.s32.f32 %v120
    %v123 = vcvt.s32.f32 %v121
    %v124 = vld [vmem:[#allocation2] sm:$0xff]
    %v125 = vld [vmem:[#allocation2 + $0x8] sm:$0xff]
    %v126 = vsel %vm101, %v86, -1e+30
    %v127 = vsel %vm101, %v89, -1e+30
    %128 = vmax.xlane.f32.xlu0 %v126
    %v129 = vpop.xlane.xlu0 %128
    %130 = vmax.xlane.f32.xlu0 %v127
    %v131 = vpop.xlane.xlu0 %130
    %v132 = vmax.f32 %v124, %v129
    %v133 = vmax.f32 %v125, %v131
    %v134 = vsub.f32 %v124, %v132
    %v135 = vsub.f32 %v125, %v133
    %v136 = vmul.f32 %v134, 1.442695
    %v137 = vpow.pop %v136
    %v138 = vmul.f32 %v135, 1.442695
    %v139 = vpow.pop %v138
    %141 = vset.pattern.permute.xlu0 0
    %142 = vperm.xlu0 %141, %v132
    %v143 = vpop.permute.xlu0 %142
    %146 = vset.pattern.permute.xlu0 0
    %147 = vperm.xlu0 %146, %v133
    %v148 = vpop.permute.xlu0 %147
    %v150 = vsub.f32 %v86, %v143
    %v151 = vsub.f32 %v89, %v148
    %v152 = vmul.f32 %v150, 1.442695
    %v153 = vpow.pop %v152
    %v154 = vmul.f32 %v151, 1.442695
    %v155 = vpow.pop %v154
    %v156 = vsel %vm104, %v153, 0.0
    %v157 = vsel %vm105, %v155, 0.0
    %v158 = vld [vmem:[#allocation3] sm:$0xff]
    %v159 = vld [vmem:[#allocation3 + $0x8] sm:$0xff]
    %v160 = vmul.f32 %v137, %v158
    %v161 = vmul.f32 %v139, %v159
    %162 = vadd.xlane.f32.xlu0 %v156
    %v163 = vpop.xlane.xlu0 %162
    %164 = vadd.xlane.f32.xlu0 %v157
    %v165 = vpop.xlane.xlu0 %164
    %v166 = vadd.f32 %v160, %v163
    %v167 = vadd.f32 %v161, %v165
    %vm168 = vcmask 7168
    %169 = vst.msk [vmem:[#allocation3] sm:$0xff] %vm168, %v166
    %170 = vst.msk [vmem:[#allocation3 + $0x8] sm:$0xff] %vm168, %v167
    %v171 = vld [vmem:[#allocation4] sm:$0xff]
    %v172 = vld [vmem:[#allocation4 + $0x8] sm:$0xff]
    %v173 = vmul.f32 %v122, %v86
    %v174 = vmul.f32 %v123, %v89
    %175 = vadd.xlane.f32.xlu0 %v173
    %v176 = vpop.xlane.xlu0 %175
    %177 = vadd.xlane.f32.xlu0 %v174
    %v178 = vpop.xlane.xlu0 %177
    %v179 = vadd.f32 %v171, %v176
    %v180 = vadd.f32 %v172, %v178
    %181 = vst.msk [vmem:[#allocation4] sm:$0xff] %vm168, %v179
    %182 = vst.msk [vmem:[#allocation4 + $0x8] sm:$0xff] %vm168, %v180
    %v183 = vld [vmem:[#allocation5] sm:$0xff]
    %v184 = vld [vmem:[#allocation5 + $0x8] sm:$0xff]
    %185 = vadd.xlane.f32.xlu0 %v122
    %v186 = vpop.xlane.xlu0 %185
    %187 = vadd.xlane.f32.xlu0 %v123
    %v188 = vpop.xlane.xlu0 %187
    %v189 = vadd.f32 %v183, %v186
    %v190 = vadd.f32 %v184, %v188
    %191 = vst.msk [vmem:[#allocation5] sm:$0xff] %vm168, %v189
    %192 = vst.msk [vmem:[#allocation5 + $0x8] sm:$0xff] %vm168, %v190
    %193 = vst.msk [vmem:[#allocation2] sm:$0xff] %vm168, %v132
    %194 = vst.msk [vmem:[#allocation2 + $0x8] sm:$0xff] %vm168, %v133
    // Predicated region
    $region26: #{tpu_custom_call.1} parent=1 // pred_check
      %p195 = pneg %p35
    $region27: #{tpu_custom_call.1} parent=1 // pred_check_branch
      %197 = sbr.rel (%p195) target = $region29
    $region28: #{tpu_custom_call.1} parent=1 // pred_region
      %v198 = vld [vmem:[#allocation5] sm:$0xff]
      %v199 = vld [vmem:[#allocation5 + $0x8] sm:$0xff]
      %v200 = vmax.f32 %v198, 1.0
      %v201 = vmax.f32 %v199, 1.0
      %v202 = vld [vmem:[#allocation2] sm:$0xff]
      %v203 = vld [vmem:[#allocation2 + $0x8] sm:$0xff]
      %v204 = vld [vmem:[#allocation3] sm:$0xff]
      %v205 = vld [vmem:[#allocation3 + $0x8] sm:$0xff]
      %v206 = vlog2.pop %v204
      %v207 = vmul.f32 %v206, 0.6931472
      %v208 = vlog2.pop %v205
      %v209 = vmul.f32 %v208, 0.6931472
      %v210 = vadd.f32 %v202, %v207
      %v211 = vadd.f32 %v203, %v209
      %v212 = vld [vmem:[#allocation4] sm:$0xff]
      %v213 = vld [vmem:[#allocation4 + $0x8] sm:$0xff]
      %v214 = vrcp.pop %v200
      %v215 = vmul.f32 %v200, %v214
      %v216 = vsub.f32 1.0, %v215
      %v217 = vmul.f32 %v214, %v216
      %v218 = vadd.f32 %v214, %v217
      %vm219 = vweird.f32 %v200
      %vm220 = vweird.f32 %v214
      %vm221 = vmor %vm219, %vm220
      %v222 = vsel %vm221, %v214, %v218
      %v223 = vand.u32 2147483647, %v200
      %vm224 = vcmp.eq.f32.partialorder %v223, 8.507059e+37
      %v225 = vand.u32 %v200, 2147483648
      %v226 = vor.u32 1.1754944e-38, %v225
      %v227 = vsel %vm224, %v226, %v222
      %v228 = vmul.f32 %v212, %v227
      %v229 = vrcp.pop %v201
      %v230 = vmul.f32 %v201, %v229
      %v231 = vsub.f32 1.0, %v230
      %v232 = vmul.f32 %v229, %v231
      %v233 = vadd.f32 %v229, %v232
      %vm234 = vweird.f32 %v201
      %vm235 = vweird.f32 %v229
      %vm236 = vmor %vm234, %vm235
      %v237 = vsel %vm236, %v229, %v233
      %v238 = vand.u32 2147483647, %v201
      %vm239 = vcmp.eq.f32.partialorder %v238, 8.507059e+37
      %v240 = vand.u32 %v201, 2147483648
      %v241 = vor.u32 1.1754944e-38, %v240
      %v242 = vsel %vm239, %v241, %v237
      %v243 = vmul.f32 %v213, %v242
      %v244 = vsub.f32 %v228, %v210
      %v245 = vsub.f32 %v243, %v211
      %v246 = vmul.f32 %v244, -1.0
      %v247 = vmul.f32 %v245, -1.0
      %vm248 = vcmp.lt.s32.totalorder %v95, 16
      %vm249 = vcmp.lt.s32.totalorder %v96, 16
      %v250 = vsel %vm248, %v246, 0.0
      %v251 = vsel %vm249, %v247, 0.0
      %252 = vst.msk [vmem:[%s4] sm:$0xff] %vm168, %v250
      %253 = vst.msk [vmem:[%s4 + $0x8] sm:$0xff] %vm168, %v251
    $region29: #{tpu_custom_call.1} parent=1 // pred_fallthru
      _
    // Predicated region
    $region30: #{tpu_custom_call.1} parent=1 // pred_check
      _
    $region31: #{tpu_custom_call.1} parent=1 // pred_check_branch
      %255 = sbr.rel (0) target = $region33
    $region32: #{tpu_custom_call.1} parent=1 // pred_region
      _
    $region33: #{tpu_custom_call.1} parent=1 // pred_fallthru
      _
    // Predicated region
    $region34: #{tpu_custom_call.1} parent=1 // pred_check
      _
    $region35: #{tpu_custom_call.1} parent=1 // pred_check_branch
      %257 = sbr.rel (0) target = $region37
    $region36: #{tpu_custom_call.1} parent=1 // pred_region
      _
    $region37: #{tpu_custom_call.1} parent=1 // pred_fallthru
      _
    %258 = vsyncpa [#allocation7], 1

</llo_original>
